<compile_context>
chip_gen: v6e
topology: v6e:2x2x1
jax: 0.10.0
libtpu: 0.0.40
codegen_flags: <defaults>
</compile_context>

<pallas_src>
import functools

import jax
import jax.numpy as jnp
from jax.experimental import pallas as pl
from jax.experimental.pallas import tpu as pltpu


# ----------------------------------------------------------------------------
# Kernel: 3 matmuls + 2 ReLUs on one batch tile. All normalization constants
# have been folded into the weights host-side.
# ----------------------------------------------------------------------------
def fc_network_kernel(x_ref, w1_ref, b1_ref, w2_ref, b2_ref, w3_ref, b3_ref,
                      o_ref):
    x = x_ref[...]
    h1 = jnp.dot(x, w1_ref[...], preferred_element_type=jnp.float32) + b1_ref[...]
    h1 = jnp.maximum(h1, 0.0)

    h2 = jnp.dot(h1, w2_ref[...], preferred_element_type=jnp.float32) + b2_ref[...]
    h2 = jnp.maximum(h2, 0.0)

    y = jnp.dot(h2, w3_ref[...], preferred_element_type=jnp.float32) + b3_ref[...]
    o_ref[...] = y.astype(o_ref.dtype)


# ----------------------------------------------------------------------------
# Host-side parameter folding (done once, outside the kernel).
# Returns (folded_arrays_dict, output_size) -- output_size stays a Python int
# so it never enters a jit pytree.
# ----------------------------------------------------------------------------
def fold_params(params, *, lane_pad=128):
    """Fold (mean, std) normalization into W1/b1 and de-norm into W3/b3.

    Also zero-pads the output dimension of W3/b3 up to a multiple of `lane_pad`
    so the kernel's store stream is lane-dense (unmasked vst).
    """
    f32 = jnp.float32
    w1 = params["w1"].astype(f32)                       # (K, H)
    mean = jnp.concatenate(
        [params["action_mean"], params["state_mean"]], axis=1).astype(f32)  # (1, K)
    std = jnp.concatenate(
        [params["action_std"], params["state_std"]], axis=1).astype(f32)    # (1, K)
    inv_std = 1.0 / std

    w1f = w1 * inv_std.T                                # row-scale: (K,H)*(K,1)
    b1f = params["b1"].astype(f32) - (mean * inv_std) @ w1   # (1, H)

    out_std = params["output_std"].astype(f32)          # (1, O)
    out_mean = params["output_mean"].astype(f32)        # (1, O)
    w3f = params["w3"].astype(f32) * out_std            # col-scale: (H,O)*(1,O)
    b3f = params["b3"].astype(f32) * out_std + out_mean # (1, O)

    out_size = int(w3f.shape[1])                        # static Python int
    out_pad = ((out_size + lane_pad - 1) // lane_pad) * lane_pad
    if out_pad != out_size:
        w3f = jnp.pad(w3f, ((0, 0), (0, out_pad - out_size)))
        b3f = jnp.pad(b3f, ((0, 0), (0, out_pad - out_size)))

    folded = {
        "w1": w1f, "b1": b1f,
        "w2": params["w2"].astype(f32), "b2": params["b2"].astype(f32),
        "w3": w3f, "b3": b3f,
    }
    return folded, out_size


# ----------------------------------------------------------------------------
# Wrapper: concat inputs, tile the batch, call the kernel, slice output back.
# `output_size` and `tile_b` must be static Python ints (close over them with
# functools.partial before jit).
# ----------------------------------------------------------------------------
def fc_network_forward(a, s, folded, *, output_size, tile_b=256):
    """a: (B, action_size), s: (B, state_size); all float32."""
    a = a.astype(jnp.float32)
    s = s.astype(jnp.float32)
    x = jnp.concatenate([a, s], axis=1)                 # (B, K)

    B, K = x.shape
    H = folded["w1"].shape[1]
    OP = folded["w3"].shape[1]                          # padded output width
    O = int(output_size)                                # true output width (static)

    # Batch tile: multiple of 8 sublanes, capped by tile_b. Pad batch to a
    # whole number of tiles (zero rows are sliced off at the end).
    tb = min(tile_b, ((B + 7) // 8) * 8)
    n_tiles = pl.cdiv(B, tb)
    b_pad = n_tiles * tb
    if b_pad != B:
        x = jnp.pad(x, ((0, b_pad - B), (0, 0)))

    flops = 2 * b_pad * (K * H + H * H + H * OP)
    bytes_accessed = 4 * (b_pad * (K + OP)
                          + K * H + H * H + H * OP + 2 * H + OP)

    out = pl.pallas_call(
        fc_network_kernel,
        out_shape=jax.ShapeDtypeStruct((b_pad, OP), jnp.float32),
        grid_spec=pltpu.PrefetchScalarGridSpec(
            num_scalar_prefetch=0,
            grid=(n_tiles,),
            in_specs=[
                pl.BlockSpec((tb, K), lambda i: (i, 0)),    # x: batch-tiled
                pl.BlockSpec((K, H), lambda i: (0, 0)),     # weights: resident
                pl.BlockSpec((1, H), lambda i: (0, 0)),
                pl.BlockSpec((H, H), lambda i: (0, 0)),
                pl.BlockSpec((1, H), lambda i: (0, 0)),
                pl.BlockSpec((H, OP), lambda i: (0, 0)),
                pl.BlockSpec((1, OP), lambda i: (0, 0)),
            ],
            out_specs=pl.BlockSpec((tb, OP), lambda i: (i, 0)),
        ),
        compiler_params=pltpu.CompilerParams(
            dimension_semantics=("parallel",)),
        cost_estimate=pl.CostEstimate(
            flops=flops, transcendentals=0, bytes_accessed=bytes_accessed),
    )(x, folded["w1"], folded["b1"], folded["w2"], folded["b2"],
      folded["w3"], folded["b3"])

    return out[:B, :O]


# ----------------------------------------------------------------------------
# Synthetic parameters (mirrors the nn.Module's shapes).
# PyTorch nn.Linear stores weight as (out, in); here we store the transpose
# (in, out) so the kernel computes x @ W + b.
# ----------------------------------------------------------------------------
def make_params(key, action_size, state_size, output_size, hidden_size):
    ks = jax.random.split(key, 12)
    f32 = jnp.float32

    in_size = action_size + state_size
    w1 = jax.random.normal(ks[0], (in_size, hidden_size), f32) * 0.1
    b1 = jax.random.normal(ks[1], (1, hidden_size), f32) * 0.1
    w2 = jax.random.normal(ks[2], (hidden_size, hidden_size), f32) * 0.1
    b2 = jax.random.normal(ks[3], (1, hidden_size), f32) * 0.1
    w3 = jax.random.normal(ks[4], (hidden_size, output_size), f32) * 0.1
    b3 = jax.random.normal(ks[5], (1, output_size), f32) * 0.1

    action_mean = jax.random.normal(ks[6], (1, action_size), f32)
    action_std = jax.random.uniform(ks[7], (1, action_size), f32, 0.5, 2.0)
    state_mean = jax.random.normal(ks[8], (1, state_size), f32)
    state_std = jax.random.uniform(ks[9], (1, state_size), f32, 0.5, 2.0)
    output_mean = jax.random.normal(ks[10], (1, output_size), f32)
    output_std = jax.random.uniform(ks[11], (1, output_size), f32, 0.5, 2.0)

    return {
        "w1": w1, "b1": b1, "w2": w2, "b2": b2, "w3": w3, "b3": b3,
        "action_mean": action_mean, "action_std": action_std,
        "state_mean": state_mean, "state_std": state_std,
        "output_mean": output_mean, "output_std": output_std,
    }


def reference_forward(a, s, p):
    a_n = (a - p["action_mean"]) / p["action_std"]
    s_n = (s - p["state_mean"]) / p["state_std"]
    x = jnp.concatenate([a_n, s_n], axis=1)
    h1 = jnp.maximum(x @ p["w1"] + p["b1"], 0.0)
    h2 = jnp.maximum(h1 @ p["w2"] + p["b2"], 0.0)
    y = h2 @ p["w3"] + p["b3"]
    return y * p["output_std"] + p["output_mean"]


if __name__ == "__main__":
    # Small shapes consistent with the module's forward signature.
    batch = 8
    action_size = 8      # flattened action buffer size
    state_size = 24      # flattened state buffer size
    output_size = 24     # derivative size (same as state space, typically)
    hidden_size = 64     # module default

    key = jax.random.PRNGKey(0)
    k_a, k_s, k_p = jax.random.split(key, 3)
    a = jax.random.normal(k_a, (batch, action_size), jnp.float32)
    s = jax.random.normal(k_s, (batch, state_size), jnp.float32)
    params = make_params(k_p, action_size, state_size, output_size, hidden_size)

    folded, out_size = fold_params(params)    # host-side fold, done once
    fwd = jax.jit(functools.partial(
        fc_network_forward, output_size=out_size, tile_b=256))

    out = jax.block_until_ready(fwd(a, s, folded))
    ref = reference_forward(a, s, params)
    assert out.shape == (batch, output_size)
    # Folding mean/std into W1/b1 and out_std/out_mean into W3/b3 reassociates
    # f32 math; tolerance relaxed slightly vs. bit-exact.
    assert jnp.allclose(out, ref, atol=1e-3, rtol=1e-3)

    # Second check: batch not a multiple of the tile -> exercises grid > 1 and
    # the batch-padding / output-slicing path.
    k_a2, k_s2 = jax.random.split(jax.random.PRNGKey(1), 2)
    a2 = jax.random.normal(k_a2, (50, action_size), jnp.float32)
    s2 = jax.random.normal(k_s2, (50, state_size), jnp.float32)
    out2 = jax.block_until_ready(
        fc_network_forward(a2, s2, folded, output_size=out_size, tile_b=16))
    ref2 = reference_forward(a2, s2, params)
    assert out2.shape == (50, output_size)
    assert jnp.allclose(out2, ref2, atol=1e-3, rtol=1e-3)

    print("KERNEL_OK")
</pallas_src>

<mosaic_0001>
module attributes {stable_mosaic.version = 11 : i64} {
  func.func @fc_network_kernel(%arg0: i32, %arg1: memref<8x32xf32, #tpu.memory_space<vmem>>, %arg2: memref<32x64xf32, #tpu.memory_space<vmem>>, %arg3: memref<1x64xf32, #tpu.memory_space<vmem>>, %arg4: memref<64x64xf32, #tpu.memory_space<vmem>>, %arg5: memref<1x64xf32, #tpu.memory_space<vmem>>, %arg6: memref<64x128xf32, #tpu.memory_space<vmem>>, %arg7: memref<1x128xf32, #tpu.memory_space<vmem>>, %arg8: memref<8x128xf32, #tpu.memory_space<vmem>>) attributes {dimension_semantics = [#tpu.dimension_semantics<parallel>], iteration_bounds = array<i64: 1>, scalar_prefetch = 0 : i64, scratch_operands = 0 : i64, tpu.core_type = #tpu.core_type<tc>, window_params = [{transform_indices = @transform_0, window_bounds = array<i64: 8, 32>}, {pipeline_mode = #tpu.pipeline_mode<synchronous>, transform_indices = @transform_1, window_bounds = array<i64: 32, 64>}, {pipeline_mode = #tpu.pipeline_mode<synchronous>, transform_indices = @transform_2, window_bounds = array<i64: 1, 64>}, {pipeline_mode = #tpu.pipeline_mode<synchronous>, transform_indices = @transform_3, window_bounds = array<i64: 64, 64>}, {pipeline_mode = #tpu.pipeline_mode<synchronous>, transform_indices = @transform_4, window_bounds = array<i64: 1, 64>}, {pipeline_mode = #tpu.pipeline_mode<synchronous>, transform_indices = @transform_5, window_bounds = array<i64: 64, 128>}, {pipeline_mode = #tpu.pipeline_mode<synchronous>, transform_indices = @transform_6, window_bounds = array<i64: 1, 128>}, {transform_indices = @transform_7, window_bounds = array<i64: 8, 128>}]} {
    %c0 = arith.constant 0 : index
    %c0_0 = arith.constant 0 : index
    %0 = vector.load %arg1[%c0, %c0_0] : memref<8x32xf32, #tpu.memory_space<vmem>>, vector<8x32xf32>
    %c0_1 = arith.constant 0 : index
    %c0_2 = arith.constant 0 : index
    %1 = vector.load %arg2[%c0_1, %c0_2] : memref<32x64xf32, #tpu.memory_space<vmem>>, vector<32x64xf32>
    %cst = arith.constant dense<0.000000e+00> : vector<8x64xf32>
    %2 = tpu.matmul %0, %1, %cst {dimension_numbers = #tpu.dot_dimension_numbers<[1], [0], [0], [1], [0, 0, 1, 1], [], []>} : vector<8x32xf32>, vector<32x64xf32>, vector<8x64xf32> -> vector<8x64xf32>
    %c0_3 = arith.constant 0 : index
    %c0_4 = arith.constant 0 : index
    %3 = vector.load %arg3[%c0_3, %c0_4] : memref<1x64xf32, #tpu.memory_space<vmem>>, vector<1x64xf32>
    %4 = vector.broadcast %3 : vector<1x64xf32> to vector<8x64xf32>
    %5 = arith.addf %2, %4 : vector<8x64xf32>
    %cst_5 = arith.constant 0.000000e+00 : f32
    %6 = vector.broadcast %cst_5 : f32 to vector<8x64xf32>
    %7 = arith.maximumf %5, %6 : vector<8x64xf32>
    %c0_6 = arith.constant 0 : index
    %c0_7 = arith.constant 0 : index
    %8 = vector.load %arg4[%c0_6, %c0_7] : memref<64x64xf32, #tpu.memory_space<vmem>>, vector<64x64xf32>
    %cst_8 = arith.constant dense<0.000000e+00> : vector<8x64xf32>
    %9 = tpu.matmul %7, %8, %cst_8 {dimension_numbers = #tpu.dot_dimension_numbers<[1], [0], [0], [1], [0, 0, 1, 1], [], []>} : vector<8x64xf32>, vector<64x64xf32>, vector<8x64xf32> -> vector<8x64xf32>
    %c0_9 = arith.constant 0 : index
    %c0_10 = arith.constant 0 : index
    %10 = vector.load %arg5[%c0_9, %c0_10] : memref<1x64xf32, #tpu.memory_space<vmem>>, vector<1x64xf32>
    %11 = vector.broadcast %10 : vector<1x64xf32> to vector<8x64xf32>
    %12 = arith.addf %9, %11 : vector<8x64xf32>
    %cst_11 = arith.constant 0.000000e+00 : f32
    %13 = vector.broadcast %cst_11 : f32 to vector<8x64xf32>
    %14 = arith.maximumf %12, %13 : vector<8x64xf32>
    %c0_12 = arith.constant 0 : index
    %c0_13 = arith.constant 0 : index
    %15 = vector.load %arg6[%c0_12, %c0_13] : memref<64x128xf32, #tpu.memory_space<vmem>>, vector<64x128xf32>
    %cst_14 = arith.constant dense<0.000000e+00> : vector<8x128xf32>
    %16 = tpu.matmul %14, %15, %cst_14 {dimension_numbers = #tpu.dot_dimension_numbers<[1], [0], [0], [1], [0, 0, 1, 1], [], []>} : vector<8x64xf32>, vector<64x128xf32>, vector<8x128xf32> -> vector<8x128xf32>
    %c0_15 = arith.constant 0 : index
    %c0_16 = arith.constant 0 : index
    %17 = vector.load %arg7[%c0_15, %c0_16] : memref<1x128xf32, #tpu.memory_space<vmem>>, vector<1x128xf32>
    %18 = vector.broadcast %17 : vector<1x128xf32> to vector<8x128xf32>
    %19 = arith.addf %16, %18 : vector<8x128xf32>
    %c0_17 = arith.constant 0 : index
    %c0_18 = arith.constant 0 : index
    %20 = vector.load %arg8[%c0_17, %c0_18] : memref<8x128xf32, #tpu.memory_space<vmem>>, vector<8x128xf32>
    tpu.vector_store %arg8[%c0_17, %c0_18], %19 {strides = array<i32>} : memref<8x128xf32, #tpu.memory_space<vmem>>, vector<8x128xf32>,
    return
  }
  func.func @transform_0(%arg0: i32) -> (i32, i32) {
    %c0_i32 = arith.constant 0 : i32
    %c0_i32_0 = arith.constant 0 : i32
    return %arg0, %c0_i32 : i32, i32
  }
  func.func @transform_1(%arg0: i32) -> (i32, i32) {
    %c0_i32 = arith.constant 0 : i32
    %c0_i32_0 = arith.constant 0 : i32
    %c0_i32_1 = arith.constant 0 : i32
    return %c0_i32, %c0_i32_0 : i32, i32
  }
  func.func @transform_2(%arg0: i32) -> (i32, i32) {
    %c0_i32 = arith.constant 0 : i32
    %c0_i32_0 = arith.constant 0 : i32
    %c0_i32_1 = arith.constant 0 : i32
    return %c0_i32, %c0_i32_0 : i32, i32
  }
  func.func @transform_3(%arg0: i32) -> (i32, i32) {
    %c0_i32 = arith.constant 0 : i32
    %c0_i32_0 = arith.constant 0 : i32
    %c0_i32_1 = arith.constant 0 : i32
    return %c0_i32, %c0_i32_0 : i32, i32
  }
  func.func @transform_4(%arg0: i32) -> (i32, i32) {
    %c0_i32 = arith.constant 0 : i32
    %c0_i32_0 = arith.constant 0 : i32
    %c0_i32_1 = arith.constant 0 : i32
    return %c0_i32, %c0_i32_0 : i32, i32
  }
  func.func @transform_5(%arg0: i32) -> (i32, i32) {
    %c0_i32 = arith.constant 0 : i32
    %c0_i32_0 = arith.constant 0 : i32
    %c0_i32_1 = arith.constant 0 : i32
    return %c0_i32, %c0_i32_0 : i32, i32
  }
  func.func @transform_6(%arg0: i32) -> (i32, i32) {
    %c0_i32 = arith.constant 0 : i32
    %c0_i32_0 = arith.constant 0 : i32
    %c0_i32_1 = arith.constant 0 : i32
    return %c0_i32, %c0_i32_0 : i32, i32
  }
  func.func @transform_7(%arg0: i32) -> (i32, i32) {
    %c0_i32 = arith.constant 0 : i32
    %c0_i32_0 = arith.constant 0 : i32
    return %arg0, %c0_i32 : i32, i32
  }
}

</mosaic_0001>

<llo_original>
// kernel: fc_network_forward.1
$region0: #{fc_network_forward.1}
  #allocation0 [shape = 'u32[]', space=smem, size = 0x4, offset = 0x4, fixed_abs, tag = 'smem constant byte address 0x4 - core index']
  #allocation1 [shape = 'u32[144,128]{1,0:T(1,128)}', space=vmem, size = 0x12000, scoped, tag = 'internal scratch']
  %s0 = inlined_call_operand.vmem [shape: f32[8,32], index: 0, kind: input, shape index: {}]
  %s1 = inlined_call_operand.vmem [shape: f32[32,64], index: 1, kind: input, shape index: {}]
  %s2 = inlined_call_operand.vmem [shape: f32[1,64], index: 2, kind: input, shape index: {}]
  %s3 = inlined_call_operand.hbm [shape: f32[64,64], index: 3, kind: input, shape index: {}]
  %s4 = inlined_call_operand.hbm [shape: f32[1,64], index: 4, kind: input, shape index: {}]
  %s5 = inlined_call_operand.hbm [shape: f32[64,128], index: 5, kind: input, shape index: {}]
  %s6 = inlined_call_operand.hbm [shape: f32[1,128], index: 6, kind: input, shape index: {}]
  %s7 = inlined_call_operand.hbm [shape: f32[8,128], index: 7, kind: output, shape index: {}]
  %s8 = sld [smem:[#allocation0]]
  $region54: #{fc_network_forward.1} parent=0
    _
  %s10 = ssub.s32 1, %s8
  %s11 = scalar_select 0, %s10, %s8
  $region1: #{fc_network_forward.1} parent=0
    #allocation2 [shape = 'u8[32768]{0}', space=vmem, size = 0x8000, scoped, tag = 'input window, operand 3, single buffered']
    #allocation3 [shape = 's32[1]{0}', space=sflag, size = 0x4, scoped, tag = 'scoped memory for fc_network_forward.1']
    #allocation4 [shape = 's32[1]{0}', space=sflag, size = 0x4, scoped, tag = 'scoped memory for fc_network_forward.1']
    #allocation5 [shape = 'u8[512]{0}', space=vmem, size = 0x400, scoped, tag = 'input window, operand 4, single buffered']
    #allocation6 [shape = 's32[1]{0}', space=sflag, size = 0x4, scoped, tag = 'scoped memory for fc_network_forward.1']
    #allocation7 [shape = 'u8[32768]{0}', space=vmem, size = 0x8000, scoped, tag = 'input window, operand 5, single buffered']
    #allocation8 [shape = 'u8[512]{0}', space=vmem, size = 0x400, scoped, tag = 'input window, operand 6, single buffered']
    #allocation9 [shape = 's32[1]{0}', space=sflag, size = 0x4, scoped, tag = 'scoped memory for fc_network_forward.1']
    #allocation10 [shape = 'u8[4096]{0}', space=vmem, size = 0x1000, scoped, tag = 'output window, operand 0, single buffered']
    %12 = vsyncpa [#allocation3], 0
    %13 = vsyncpa [#allocation6], 0
    %14 = vsyncpa [#allocation9], 0
    %15 = vsyncpa [#allocation4], 0
    // Predicated region
    $region2: #{fc_network_forward.1} parent=1 // pred_check
      _
    $region3: #{fc_network_forward.1} parent=1 // pred_check_branch
      %17 = sbr.rel (0) target = $region5
    $region4: #{fc_network_forward.1} parent=1 // pred_region
      _
    $region5: #{fc_network_forward.1} parent=1 // pred_fallthru
      _
    // Predicated region
    $region6: #{fc_network_forward.1} parent=1 // pred_check
      _
    $region7: #{fc_network_forward.1} parent=1 // pred_check_branch
      %19 = sbr.rel (0) target = $region9
    $region8: #{fc_network_forward.1} parent=1 // pred_region
      _
    $region9: #{fc_network_forward.1} parent=1 // pred_fallthru
      _
    // Predicated region
    $region10: #{fc_network_forward.1} parent=1 // pred_check
      _
    $region11: #{fc_network_forward.1} parent=1 // pred_check_branch
      %21 = sbr.rel (0) target = $region13
    $region12: #{fc_network_forward.1} parent=1 // pred_region
      _
    $region13: #{fc_network_forward.1} parent=1 // pred_fallthru
      _
    // Predicated region
    $region14: #{fc_network_forward.1} parent=1 // pred_check
      _
    $region15: #{fc_network_forward.1} parent=1 // pred_check_branch
      %23 = sbr.rel (0) target = $region17
    $region16: #{fc_network_forward.1} parent=1 // pred_region
      %s25 = ssub.s32 1024, 1024
      %26 = vsyncadd [#allocation3], %s25
      %s27 = sshll.u32 [#allocation2], 4
      %s28 = int_to_ptr.vmem [resolvable:$true] %s27
      %33 = dma.hbm_to_vmem [thread:$0]  %s3, 1024, %s28, [#allocation3], 128, 128, 8
    $region17: #{fc_network_forward.1} parent=1 // pred_fallthru
      _
    // Predicated region
    $region18: #{fc_network_forward.1} parent=1 // pred_check
      _
    $region19: #{fc_network_forward.1} parent=1 // pred_check_branch
      %35 = sbr.rel (0) target = $region21
    $region20: #{fc_network_forward.1} parent=1 // pred_region
      %s37 = ssub.s32 16, 16
      %38 = vsyncadd [#allocation6], %s37
      %s40 = sshll.u32 [#allocation5], 4
      %s41 = int_to_ptr.vmem [resolvable:$true] %s40
      %43 = dma.hbm_to_vmem [thread:$0]  %s4, 16, %s41, [#allocation6]
    $region21: #{fc_network_forward.1} parent=1 // pred_fallthru
      _
    // Predicated region
    $region22: #{fc_network_forward.1} parent=1 // pred_check
      _
    $region23: #{fc_network_forward.1} parent=1 // pred_check_branch
      %45 = sbr.rel (0) target = $region25
    $region24: #{fc_network_forward.1} parent=1 // pred_region
      %s47 = ssub.s32 1024, 1024
      %48 = vsyncadd [#allocation6], %s47
      %s49 = sshll.u32 [#allocation7], 4
      %s50 = int_to_ptr.vmem [resolvable:$true] %s49
      %55 = dma.hbm_to_vmem [thread:$0]  %s5, 1024, %s50, [#allocation6], 128, 128, 8
    $region25: #{fc_network_forward.1} parent=1 // pred_fallthru
      _
    // Predicated region
    $region26: #{fc_network_forward.1} parent=1 // pred_check
      _
    $region27: #{fc_network_forward.1} parent=1 // pred_check_branch
      %57 = sbr.rel (0) target = $region29
    $region28: #{fc_network_forward.1} parent=1 // pred_region
      %s59 = ssub.s32 16, 16
      %60 = vsyncadd [#allocation9], %s59
      %s62 = sshll.u32 [#allocation8], 4
      %s63 = int_to_ptr.vmem [resolvable:$true] %s62
      %65 = dma.hbm_to_vmem [thread:$0]  %s6, 16, %s63, [#allocation9]
    $region29: #{fc_network_forward.1} parent=1 // pred_fallthru
      _
    // Predicated region
    $region30: #{fc_network_forward.1} parent=1 // pred_check
      _
    $region31: #{fc_network_forward.1} parent=1 // pred_check_branch
      %67 = sbr.rel (0) target = $region33
    $region32: #{fc_network_forward.1} parent=1 // pred_region
      %68 = dma.done [#allocation3], 1024
    $region33: #{fc_network_forward.1} parent=1 // pred_fallthru
      _
    // Predicated region
    $region34: #{fc_network_forward.1} parent=1 // pred_check
      _
    $region35: #{fc_network_forward.1} parent=1 // pred_check_branch
      %70 = sbr.rel (0) target = $region37
    $region36: #{fc_network_forward.1} parent=1 // pred_region
      %71 = dma.done [#allocation6], 16
    $region37: #{fc_network_forward.1} parent=1 // pred_fallthru
      _
    // Predicated region
    $region38: #{fc_network_forward.1} parent=1 // pred_check
      _
    $region39: #{fc_network_forward.1} parent=1 // pred_check_branch
      %73 = sbr.rel (0) target = $region41
    $region40: #{fc_network_forward.1} parent=1 // pred_region
      %74 = dma.done [#allocation6], 1024
    $region41: #{fc_network_forward.1} parent=1 // pred_fallthru
      _
    // Predicated region
    $region42: #{fc_network_forward.1} parent=1 // pred_check
      _
    $region43: #{fc_network_forward.1} parent=1 // pred_check_branch
      %76 = sbr.rel (0) target = $region45
    $region44: #{fc_network_forward.1} parent=1 // pred_region
      %77 = dma.done [#allocation9], 16
    $region45: #{fc_network_forward.1} parent=1 // pred_fallthru
      _
    %v78 = vld [vmem:[%s0] sm:$0xff]
    %v79 = vld [vmem:[%s1] sm:$0xff]
    %v80 = vld [vmem:[%s1 + $0x8] sm:$0xff]
    %v81 = vld [vmem:[%s1 + $0x10] sm:$0xff]
    %v82 = vld [vmem:[%s1 + $0x18] sm:$0xff]
    %v83 = vld [vmem:[%s2] sm:$0x1]
    %v85 = vlaneseq
    %v86 = vshrl.u32 %v85, 7
    %v87 = vsub.s32 0, %v86
    %v88 = vrot.slane %v83, %v87
    %vm90 = vcmask 261120
    %v92 = vsel %vm90, %v78, 0
    %94 = vmatprep.subr.mxu0 0.0
    %95 = vmatpush1.msra.mxu0 0.0
    %96 = vmatprep.subr.mxu0 0.0
    %97 = vmatpush1.msra.mxu0 0.0
    %98 = vmatprep.subr.mxu0 0.0
    %99 = vmatpush1.msra.mxu0 0.0
    %100 = vmatprep.subr.mxu0 0.0
    %101 = vmatpush1.msra.mxu0 0.0
    %102 = vmatprep.subr.mxu0 0.0
    %103 = vmatpush1.msra.mxu0 0.0
    %104 = vmatprep.subr.mxu0 0.0
    %105 = vmatpush1.msra.mxu0 0.0
    %106 = vmatprep.subr.mxu0 0.0
    %107 = vmatpush1.msra.mxu0 0.0
    %108 = vmatprep.subr.mxu0 0.0
    %109 = vmatpush1.msra.mxu0 0.0
    %110 = vmatprep.subr.mxu0 0.0
    %111 = vmatpush1.msra.mxu0 0.0
    %112 = vmatprep.subr.mxu0 0.0
    %113 = vmatpush1.msra.mxu0 0.0
    %114 = vmatprep.subr.mxu0 0.0
    %115 = vmatpush1.msra.mxu0 0.0
    %116 = vmatprep.subr.mxu0 0.0
    %117 = vmatpush1.msra.mxu0 0.0
    %118 = vmatprep.subr.mxu0 0.0
    %119 = vmatpush1.msra.mxu0 %v82
    %120 = vmatprep.subr.mxu0 0.0
    %121 = vmatpush1.msra.mxu0 %v81
    %122 = vmatprep.subr.mxu0 0.0
    %123 = vmatpush1.msra.mxu0 %v80
    %124 = vmatprep.subr.mxu0 0.0
    %125 = vmatpush1.msra.mxu0 %v79
    %126 = vmatprep.subr.mxu0 0.0
    %127 = vmatpush2.msra.mxu0 0.0
    %128 = vmatprep.subr.mxu0 0.0
    %129 = vmatpush2.msra.mxu0 0.0
    %130 = vmatprep.subr.mxu0 0.0
    %131 = vmatpush2.msra.mxu0 0.0
    %132 = vmatprep.subr.mxu0 0.0
    %133 = vmatpush2.msra.mxu0 0.0
    %134 = vmatprep.subr.mxu0 0.0
    %135 = vmatpush2.msra.mxu0 0.0
    %136 = vmatprep.subr.mxu0 0.0
    %137 = vmatpush2.msra.mxu0 0.0
    %138 = vmatprep.subr.mxu0 0.0
    %139 = vmatpush2.msra.mxu0 0.0
    %140 = vmatprep.subr.mxu0 0.0
    %141 = vmatpush2.msra.mxu0 0.0
    %142 = vmatprep.subr.mxu0 0.0
    %143 = vmatpush2.msra.mxu0 0.0
    %144 = vmatprep.subr.mxu0 0.0
    %145 = vmatpush2.msra.mxu0 0.0
    %146 = vmatprep.subr.mxu0 0.0
    %147 = vmatpush2.msra.mxu0 0.0
    %148 = vmatprep.subr.mxu0 0.0
    %149 = vmatpush2.msra.mxu0 0.0
    %150 = vmatprep.subr.mxu0 0.0
    %151 = vmatpush2.msra.mxu0 0.0
    %152 = vmatprep.subr.mxu0 0.0
    %153 = vmatpush2.msra.mxu0 0.0
    %154 = vmatprep.subr.mxu0 0.0
    %155 = vmatpush2.msra.mxu0 0.0
    %156 = vmatprep.subr.mxu0 0.0
    %157 = vmatpush2.msra.mxu0 0.0
    %158 = vmatprep.mubr.f32.mxu0 0.0
    %159 = vmatmul.mubr.f32.gmra.mxu0 %v92
    %v160 = vpop.f32.mrf.mxu0
    %v161 = vadd.f32 %v88, %v160
    %v162 = vpop.f32.mrf.mxu0
    %163 = vdwg.mxu0
    %v164 = vmax.f32 %v161, 0.0
    %v165 = vld [vmem:[#allocation2] sm:$0xff]
    %v166 = vld [vmem:[#allocation2 + $0x8] sm:$0xff]
    %v167 = vld [vmem:[#allocation2 + $0x10] sm:$0xff]
    %v168 = vld [vmem:[#allocation2 + $0x18] sm:$0xff]
    %v169 = vld [vmem:[#allocation2 + $0x20] sm:$0xff]
    %v170 = vld [vmem:[#allocation2 + $0x28] sm:$0xff]
    %v171 = vld [vmem:[#allocation2 + $0x30] sm:$0xff]
    %v172 = vld [vmem:[#allocation2 + $0x38] sm:$0xff]
    %v173 = vld [vmem:[#allocation5] sm:$0x1]
    %v175 = vlaneseq
    %v176 = vshrl.u32 %v175, 7
    %v177 = vsub.s32 0, %v176
    %v178 = vrot.slane %v173, %v177
    %vm180 = vcmask 523264
    %v182 = vsel %vm180, %v164, 0
    %184 = vmatprep.subr.mxu0 0.0
    %185 = vmatpush1.msra.mxu0 0.0
    %186 = vmatprep.subr.mxu0 0.0
    %187 = vmatpush1.msra.mxu0 0.0
    %188 = vmatprep.subr.mxu0 0.0
    %189 = vmatpush1.msra.mxu0 0.0
    %190 = vmatprep.subr.mxu0 0.0
    %191 = vmatpush1.msra.mxu0 0.0
    %192 = vmatprep.subr.mxu0 0.0
    %193 = vmatpush1.msra.mxu0 0.0
    %194 = vmatprep.subr.mxu0 0.0
    %195 = vmatpush1.msra.mxu0 0.0
    %196 = vmatprep.subr.mxu0 0.0
    %197 = vmatpush1.msra.mxu0 0.0
    %198 = vmatprep.subr.mxu0 0.0
    %199 = vmatpush1.msra.mxu0 0.0
    %200 = vmatprep.subr.mxu0 0.0
    %201 = vmatpush1.msra.mxu0 %v172
    %202 = vmatprep.subr.mxu0 0.0
    %203 = vmatpush1.msra.mxu0 %v171
    %204 = vmatprep.subr.mxu0 0.0
    %205 = vmatpush1.msra.mxu0 %v170
    %206 = vmatprep.subr.mxu0 0.0
    %207 = vmatpush1.msra.mxu0 %v169
    %208 = vmatprep.subr.mxu0 0.0
    %209 = vmatpush1.msra.mxu0 %v168
    %210 = vmatprep.subr.mxu0 0.0
    %211 = vmatpush1.msra.mxu0 %v167
    %212 = vmatprep.subr.mxu0 0.0
    %213 = vmatpush1.msra.mxu0 %v166
    %214 = vmatprep.subr.mxu0 0.0
    %215 = vmatpush1.msra.mxu0 %v165
    %216 = vmatprep.subr.mxu0 0.0
    %217 = vmatpush2.msra.mxu0 0.0
    %218 = vmatprep.subr.mxu0 0.0
    %219 = vmatpush2.msra.mxu0 0.0
    %220 = vmatprep.subr.mxu0 0.0
    %221 = vmatpush2.msra.mxu0 0.0
    %222 = vmatprep.subr.mxu0 0.0
    %223 = vmatpush2.msra.mxu0 0.0
    %224 = vmatprep.subr.mxu0 0.0
    %225 = vmatpush2.msra.mxu0 0.0
    %226 = vmatprep.subr.mxu0 0.0
    %227 = vmatpush2.msra.mxu0 0.0
    %228 = vmatprep.subr.mxu0 0.0
    %229 = vmatpush2.msra.mxu0 0.0
    %230 = vmatprep.subr.mxu0 0.0
    %231 = vmatpush2.msra.mxu0 0.0
    %232 = vmatprep.subr.mxu0 0.0
    %233 = vmatpush2.msra.mxu0 0.0
    %234 = vmatprep.subr.mxu0 0.0
    %235 = vmatpush2.msra.mxu0 0.0
    %236 = vmatprep.subr.mxu0 0.0
    %237 = vmatpush2.msra.mxu0 0.0
    %238 = vmatprep.subr.mxu0 0.0
    %239 = vmatpush2.msra.mxu0 0.0
    %240 = vmatprep.subr.mxu0 0.0
    %241 = vmatpush2.msra.mxu0 0.0
    %242 = vmatprep.subr.mxu0 0.0
    %243 = vmatpush2.msra.mxu0 0.0
    %244 = vmatprep.subr.mxu0 0.0
    %245 = vmatpush2.msra.mxu0 0.0
    %246 = vmatprep.subr.mxu0 0.0
    %247 = vmatpush2.msra.mxu0 0.0
    %248 = vmatprep.mubr.f32.mxu0 0.0
    %249 = vmatmul.mubr.f32.gmra.mxu0 %v182
    %v250 = vpop.f32.mrf.mxu0
    %v251 = vadd.f32 %v178, %v250
    %v252 = vpop.f32.mrf.mxu0
    %253 = vdwg.mxu0
    %v254 = vmax.f32 %v251, 0.0
    %v255 = vld [vmem:[#allocation7] sm:$0xff]
    %v256 = vld [vmem:[#allocation7 + $0x8] sm:$0xff]
    %v257 = vld [vmem:[#allocation7 + $0x10] sm:$0xff]
    %v258 = vld [vmem:[#allocation7 + $0x18] sm:$0xff]
    %v259 = vld [vmem:[#allocation7 + $0x20] sm:$0xff]
    %v260 = vld [vmem:[#allocation7 + $0x28] sm:$0xff]
    %v261 = vld [vmem:[#allocation7 + $0x30] sm:$0xff]
    %v262 = vld [vmem:[#allocation7 + $0x38] sm:$0xff]
    %v263 = vld [vmem:[#allocation8] sm:$0x1]
    %v265 = vlaneseq
    %v266 = vshrl.u32 %v265, 7
    %v267 = vsub.s32 0, %v266
    %v268 = vrot.slane %v263, %v267
    %v271 = vsel %vm180, %v254, 0
    %273 = vmatprep.subr.mxu0 0.0
    %274 = vmatpush1.msra.mxu0 0.0
    %275 = vmatprep.subr.mxu0 0.0
    %276 = vmatpush1.msra.mxu0 0.0
    %277 = vmatprep.subr.mxu0 0.0
    %278 = vmatpush1.msra.mxu0 0.0
    %279 = vmatprep.subr.mxu0 0.0
    %280 = vmatpush1.msra.mxu0 0.0
    %281 = vmatprep.subr.mxu0 0.0
    %282 = vmatpush1.msra.mxu0 0.0
    %283 = vmatprep.subr.mxu0 0.0
    %284 = vmatpush1.msra.mxu0 0.0
    %285 = vmatprep.subr.mxu0 0.0
    %286 = vmatpush1.msra.mxu0 0.0
    %287 = vmatprep.subr.mxu0 0.0
    %288 = vmatpush1.msra.mxu0 0.0
    %289 = vmatprep.subr.mxu0 0.0
    %290 = vmatpush1.msra.mxu0 %v262
    %291 = vmatprep.subr.mxu0 0.0
    %292 = vmatpush1.msra.mxu0 %v261
    %293 = vmatprep.subr.mxu0 0.0
    %294 = vmatpush1.msra.mxu0 %v260
    %295 = vmatprep.subr.mxu0 0.0
    %296 = vmatpush1.msra.mxu0 %v259
    %297 = vmatprep.subr.mxu0 0.0
    %298 = vmatpush1.msra.mxu0 %v258
    %299 = vmatprep.subr.mxu0 0.0
    %300 = vmatpush1.msra.mxu0 %v257
    %301 = vmatprep.subr.mxu0 0.0
    %302 = vmatpush1.msra.mxu0 %v256
    %303 = vmatprep.subr.mxu0 0.0
    %304 = vmatpush1.msra.mxu0 %v255
    %305 = vmatprep.subr.mxu0 0.0
    %306 = vmatpush2.msra.mxu0 0.0
    %307 = vmatprep.subr.mxu0 0.0
    %308 = vmatpush2.msra.mxu0 0.0
    %309 = vmatprep.subr.mxu0 0.0
    %310 = vmatpush2.msra.mxu0 0.0
    %311 = vmatprep.subr.mxu0 0.0
    %312 = vmatpush2.msra.mxu0 0.0
    %313 = vmatprep.subr.mxu0 0.0
    %314 = vmatpush2.msra.mxu0 0.0
    %315 = vmatprep.subr.mxu0 0.0
    %316 = vmatpush2.msra.mxu0 0.0
    %317 = vmatprep.subr.mxu0 0.0
    %318 = vmatpush2.msra.mxu0 0.0
    %319 = vmatprep.subr.mxu0 0.0
    %320 = vmatpush2.msra.mxu0 0.0
    %321 = vmatprep.subr.mxu0 0.0
    %322 = vmatpush2.msra.mxu0 0.0
    %323 = vmatprep.subr.mxu0 0.0
    %324 = vmatpush2.msra.mxu0 0.0
    %325 = vmatprep.subr.mxu0 0.0
    %326 = vmatpush2.msra.mxu0 0.0
    %327 = vmatprep.subr.mxu0 0.0
    %328 = vmatpush2.msra.mxu0 0.0
    %329 = vmatprep.subr.mxu0 0.0
    %330 = vmatpush2.msra.mxu0 0.0
    %331 = vmatprep.subr.mxu0 0.0
    %332 = vmatpush2.msra.mxu0 0.0
    %333 = vmatprep.subr.mxu0 0.0
    %334 = vmatpush2.msra.mxu0 0.0
    %335 = vmatprep.subr.mxu0 0.0
    %336 = vmatpush2.msra.mxu0 0.0
    %337 = vmatprep.mubr.f32.mxu0 0.0
    %338 = vmatmul.mubr.f32.gmra.mxu0 %v271
    %v339 = vpop.f32.mrf.mxu0
    %v340 = vadd.f32 %v268, %v339
    %v341 = vpop.f32.mrf.mxu0
    %342 = vdwg.mxu0
    %343 = vst [vmem:[#allocation10] sm:$0xff] %v340
    // Predicated region
    $region46: #{fc_network_forward.1} parent=1 // pred_check
      _
    $region47: #{fc_network_forward.1} parent=1 // pred_check_branch
      %345 = sbr.rel (0) target = $region49
    $region48: #{fc_network_forward.1} parent=1 // pred_region
      %s347 = ssub.s32 128, 128
      %348 = vsyncadd [#allocation4], %s347
      %s350 = sshll.u32 [#allocation10], 4
      %s351 = int_to_ptr.vmem [resolvable:$true] %s350
      %353 = dma.vmem_to_hbm [thread:$0]  %s351, 128, %s7, [#allocation4]
    $region49: #{fc_network_forward.1} parent=1 // pred_fallthru
      _
    // Predicated region
    $region50: #{fc_network_forward.1} parent=1 // pred_check
      _
    $region51: #{fc_network_forward.1} parent=1 // pred_check_branch
      %355 = sbr.rel (0) target = $region53
    $region52: #{fc_network_forward.1} parent=1 // pred_region
      %356 = dma.done [#allocation4], 128
    $region53: #{fc_network_forward.1} parent=1 // pred_fallthru
      _
    %357 = vsyncpa [#allocation3], 1
    %358 = vsyncpa [#allocation6], 1
    %359 = vsyncpa [#allocation9], 1
    %360 = vsyncpa [#allocation4], 1

</llo_original>
